<compile_context>
chip_gen: v6e
topology: v6e:2x2x1
jax: 0.10.0
libtpu: 0.0.40
codegen_flags: <defaults>
</compile_context>

<pallas_src>
import jax
import jax.numpy as jnp
from jax.experimental import pallas as pl
from jax.experimental.pallas import tpu as pltpu

HIDDEN = 64
MAX_TM = 512  # max samples (lanes) per grid step; multiple of 128


def pinn_kernel(x_ref, w1c_ref, b1c_ref, w2t_ref, b2c_ref, w3c_ref, b3_ref,
                o_ref):
    # Shapes (feature-major layout, samples along lanes):
    #   x_ref : (1, TM)    w1c / b1c / b2c / w3c : (64, 1)
    #   w2t   : (64, 64)   b3 : (1, 1)            o_ref : (1, TM)
    x = x_ref[...]                                              # (1, TM)

    # Layer 1: K=1 contraction as a VPU broadcast multiply (no MXU).
    h1 = jnp.tanh(w1c_ref[...] * x + b1c_ref[...])              # (64, TM)

    # Layer 2: the only real matmul, (64, 64) @ (64, TM) on the MXU.
    h2 = jnp.tanh(
        jnp.dot(w2t_ref[...], h1, preferred_element_type=jnp.float32)
        + b2c_ref[...]
    )                                                           # (64, TM)

    # Layer 3: N=1 contraction as VPU multiply + cross-sublane (XLU) reduce.
    out = jnp.sum(h2 * w3c_ref[...], axis=0, keepdims=True) + b3_ref[...]
    o_ref[...] = out.astype(o_ref.dtype)                        # (1, TM)


def _choose_tm(n):
    """Lane-aligned tile width: >=128, <=MAX_TM, minimal padding on tiny N."""
    return int(min(MAX_TM, max(128, 128 * pl.cdiv(n, 128))))


def pinn_forward(x, params):
    """x: (N, 1) float32. Returns (N, 1) float32 (same as the PyTorch net)."""
    w1, b1, w2, b2, w3, b3 = params
    N = x.shape[0]
    assert x.ndim == 2 and x.shape[1] == 1

    # One-time (tiny) weight re-layout to the kernel's feature-major form.
    w1c = jnp.transpose(w1)     # (64, 1)
    b1c = jnp.transpose(b1)     # (64, 1)
    w2t = jnp.transpose(w2)     # (64, 64)   since y^T = w2^T @ h1^T
    b2c = jnp.transpose(b2)     # (64, 1)
    w3c = w3                    # (64, 1)
    b3s = b3                    # (1, 1)

    # Lane-dense input: samples along the last (lane) axis, padded to TM.
    tm = _choose_tm(N)
    n_tiles = pl.cdiv(N, tm)
    n_pad = n_tiles * tm
    x_row = jnp.pad(x[:, 0], (0, n_pad - N)).reshape(1, n_pad)

    def const_spec(shape):
        return pl.BlockSpec(shape, lambda i: tuple(0 for _ in shape))

    out_row = pl.pallas_call(
        pinn_kernel,
        out_shape=jax.ShapeDtypeStruct((1, n_pad), jnp.float32),
        grid_spec=pltpu.PrefetchScalarGridSpec(
            num_scalar_prefetch=0,
            grid=(n_tiles,),
            in_specs=[
                pl.BlockSpec((1, tm), lambda i: (0, i)),   # lane-dense x tile
                const_spec(w1c.shape),
                const_spec(b1c.shape),
                const_spec(w2t.shape),
                const_spec(b2c.shape),
                const_spec(w3c.shape),
                const_spec(b3s.shape),
            ],
            out_specs=pl.BlockSpec((1, tm), lambda i: (0, i)),
        ),
        compiler_params=pltpu.CompilerParams(
            dimension_semantics=("parallel",),
        ),
    )(x_row, w1c, b1c, w2t, b2c, w3c, b3s)

    return out_row[0, :N].reshape(N, 1)


def init_params(key):
    """PyTorch-like nn.Linear init: U(-1/sqrt(fan_in), 1/sqrt(fan_in)).
    Weights stored (in_features, out_features)."""
    def linear(k, fan_in, fan_out):
        kw, kb = jax.random.split(k)
        bound = 1.0 / jnp.sqrt(jnp.float32(fan_in))
        w = jax.random.uniform(kw, (fan_in, fan_out), jnp.float32, -bound, bound)
        b = jax.random.uniform(kb, (1, fan_out), jnp.float32, -bound, bound)
        return w, b

    k1, k2, k3 = jax.random.split(key, 3)
    w1, b1 = linear(k1, 1, HIDDEN)
    w2, b2 = linear(k2, HIDDEN, HIDDEN)
    w3, b3 = linear(k3, HIDDEN, 1)
    return w1, b1, w2, b2, w3, b3


def pinn_reference(x, params):
    """Plain-JAX reference; full-precision matmuls match PyTorch f32 GEMMs."""
    w1, b1, w2, b2, w3, b3 = params
    hp = jax.lax.Precision.HIGHEST
    h1 = jnp.tanh(jnp.dot(x, w1, precision=hp) + b1)
    h2 = jnp.tanh(jnp.dot(h1, w2, precision=hp) + b2)
    return jnp.dot(h2, w3, precision=hp) + b3


if __name__ == "__main__":
    key = jax.random.PRNGKey(0)
    kp, kx1, kx2 = jax.random.split(key, 3)
    params = init_params(kp)

    # Small single-tile batch of collocation points.
    x_small = jax.random.uniform(kx1, (16, 1), jnp.float32, 0.0, 1.0)
    out_small = jax.block_until_ready(pinn_forward(x_small, params))
    ref_small = pinn_reference(x_small, params)
    assert out_small.shape == (16, 1)
    assert jnp.allclose(out_small, ref_small, atol=2e-3, rtol=2e-3), \
        float(jnp.max(jnp.abs(out_small - ref_small)))

    # Multi-tile batch with a ragged tail (exercises padding and grid > 1,
    # which also lets both TensorCores run on v7x).
    x_big = jax.random.uniform(kx2, (600, 1), jnp.float32, 0.0, 1.0)
    out_big = jax.block_until_ready(pinn_forward(x_big, params))
    ref_big = pinn_reference(x_big, params)
    assert out_big.shape == (600, 1)
    assert jnp.allclose(out_big, ref_big, atol=2e-3, rtol=2e-3), \
        float(jnp.max(jnp.abs(out_big - ref_big)))

    print("KERNEL_OK")
</pallas_src>

<mosaic_0001>
module attributes {stable_mosaic.version = 11 : i64} {
  func.func @pinn_kernel(%arg0: i32, %arg1: memref<1x128xf32, #tpu.memory_space<vmem>>, %arg2: memref<64x1xf32, #tpu.memory_space<vmem>>, %arg3: memref<64x1xf32, #tpu.memory_space<vmem>>, %arg4: memref<64x64xf32, #tpu.memory_space<vmem>>, %arg5: memref<64x1xf32, #tpu.memory_space<vmem>>, %arg6: memref<64x1xf32, #tpu.memory_space<vmem>>, %arg7: memref<1x1xf32, #tpu.memory_space<vmem>>, %arg8: memref<1x128xf32, #tpu.memory_space<vmem>>) attributes {dimension_semantics = [#tpu.dimension_semantics<parallel>], iteration_bounds = array<i64: 1>, scalar_prefetch = 0 : i64, scratch_operands = 0 : i64, tpu.core_type = #tpu.core_type<tc>, window_params = [{transform_indices = @transform_0, window_bounds = array<i64: 1, 128>}, {pipeline_mode = #tpu.pipeline_mode<synchronous>, transform_indices = @transform_1, window_bounds = array<i64: 64, 1>}, {pipeline_mode = #tpu.pipeline_mode<synchronous>, transform_indices = @transform_2, window_bounds = array<i64: 64, 1>}, {pipeline_mode = #tpu.pipeline_mode<synchronous>, transform_indices = @transform_3, window_bounds = array<i64: 64, 64>}, {pipeline_mode = #tpu.pipeline_mode<synchronous>, transform_indices = @transform_4, window_bounds = array<i64: 64, 1>}, {pipeline_mode = #tpu.pipeline_mode<synchronous>, transform_indices = @transform_5, window_bounds = array<i64: 64, 1>}, {pipeline_mode = #tpu.pipeline_mode<synchronous>, transform_indices = @transform_6, window_bounds = array<i64: 1, 1>}, {transform_indices = @transform_7, window_bounds = array<i64: 1, 128>}]} {
    %c0 = arith.constant 0 : index
    %c0_0 = arith.constant 0 : index
    %0 = vector.load %arg1[%c0, %c0_0] : memref<1x128xf32, #tpu.memory_space<vmem>>, vector<1x128xf32>
    %c0_1 = arith.constant 0 : index
    %c0_2 = arith.constant 0 : index
    %1 = vector.load %arg2[%c0_1, %c0_2] : memref<64x1xf32, #tpu.memory_space<vmem>>, vector<64x1xf32>
    %2 = vector.broadcast %1 : vector<64x1xf32> to vector<64x128xf32>
    %3 = vector.broadcast %0 : vector<1x128xf32> to vector<64x128xf32>
    %4 = arith.mulf %2, %3 : vector<64x128xf32>
    %c0_3 = arith.constant 0 : index
    %c0_4 = arith.constant 0 : index
    %5 = vector.load %arg3[%c0_3, %c0_4] : memref<64x1xf32, #tpu.memory_space<vmem>>, vector<64x1xf32>
    %6 = vector.broadcast %5 : vector<64x1xf32> to vector<64x128xf32>
    %7 = arith.addf %4, %6 : vector<64x128xf32>
    %8 = math.tanh %7 : vector<64x128xf32>
    %c0_5 = arith.constant 0 : index
    %c0_6 = arith.constant 0 : index
    %9 = vector.load %arg4[%c0_5, %c0_6] : memref<64x64xf32, #tpu.memory_space<vmem>>, vector<64x64xf32>
    %cst = arith.constant dense<0.000000e+00> : vector<64x128xf32>
    %10 = tpu.matmul %9, %8, %cst {dimension_numbers = #tpu.dot_dimension_numbers<[1], [0], [0], [1], [0, 0, 1, 1], [], []>} : vector<64x64xf32>, vector<64x128xf32>, vector<64x128xf32> -> vector<64x128xf32>
    %c0_7 = arith.constant 0 : index
    %c0_8 = arith.constant 0 : index
    %11 = vector.load %arg5[%c0_7, %c0_8] : memref<64x1xf32, #tpu.memory_space<vmem>>, vector<64x1xf32>
    %12 = vector.broadcast %11 : vector<64x1xf32> to vector<64x128xf32>
    %13 = arith.addf %10, %12 : vector<64x128xf32>
    %14 = math.tanh %13 : vector<64x128xf32>
    %c0_9 = arith.constant 0 : index
    %c0_10 = arith.constant 0 : index
    %15 = vector.load %arg6[%c0_9, %c0_10] : memref<64x1xf32, #tpu.memory_space<vmem>>, vector<64x1xf32>
    %16 = vector.broadcast %15 : vector<64x1xf32> to vector<64x128xf32>
    %17 = arith.mulf %14, %16 : vector<64x128xf32>
    %cst_11 = arith.constant dense<0.000000e+00> : vector<128xf32>
    %18 = vector.multi_reduction <add>, %17, %cst_11 [0] : vector<64x128xf32> to vector<128xf32>
    %19 = vector.shape_cast %18 : vector<128xf32> to vector<1x128xf32>
    %c0_12 = arith.constant 0 : index
    %c0_13 = arith.constant 0 : index
    %20 = vector.load %arg7[%c0_12, %c0_13] : memref<1x1xf32, #tpu.memory_space<vmem>>, vector<1x1xf32>
    %21 = vector.broadcast %20 : vector<1x1xf32> to vector<1x128xf32>
    %22 = arith.addf %19, %21 : vector<1x128xf32>
    %c0_14 = arith.constant 0 : index
    %c0_15 = arith.constant 0 : index
    %23 = vector.load %arg8[%c0_14, %c0_15] : memref<1x128xf32, #tpu.memory_space<vmem>>, vector<1x128xf32>
    tpu.vector_store %arg8[%c0_14, %c0_15], %22 {strides = array<i32>} : memref<1x128xf32, #tpu.memory_space<vmem>>, vector<1x128xf32>,
    return
  }
  func.func @transform_0(%arg0: i32) -> (i32, i32) {
    %c0_i32 = arith.constant 0 : i32
    %c0_i32_0 = arith.constant 0 : i32
    return %c0_i32, %arg0 : i32, i32
  }
  func.func @transform_1(%arg0: i32) -> (i32, i32) {
    %c0_i32 = arith.constant 0 : i32
    %c0_i32_0 = arith.constant 0 : i32
    %c0_i32_1 = arith.constant 0 : i32
    return %c0_i32, %c0_i32_0 : i32, i32
  }
  func.func @transform_2(%arg0: i32) -> (i32, i32) {
    %c0_i32 = arith.constant 0 : i32
    %c0_i32_0 = arith.constant 0 : i32
    %c0_i32_1 = arith.constant 0 : i32
    return %c0_i32, %c0_i32_0 : i32, i32
  }
  func.func @transform_3(%arg0: i32) -> (i32, i32) {
    %c0_i32 = arith.constant 0 : i32
    %c0_i32_0 = arith.constant 0 : i32
    %c0_i32_1 = arith.constant 0 : i32
    return %c0_i32, %c0_i32_0 : i32, i32
  }
  func.func @transform_4(%arg0: i32) -> (i32, i32) {
    %c0_i32 = arith.constant 0 : i32
    %c0_i32_0 = arith.constant 0 : i32
    %c0_i32_1 = arith.constant 0 : i32
    return %c0_i32, %c0_i32_0 : i32, i32
  }
  func.func @transform_5(%arg0: i32) -> (i32, i32) {
    %c0_i32 = arith.constant 0 : i32
    %c0_i32_0 = arith.constant 0 : i32
    %c0_i32_1 = arith.constant 0 : i32
    return %c0_i32, %c0_i32_0 : i32, i32
  }
  func.func @transform_6(%arg0: i32) -> (i32, i32) {
    %c0_i32 = arith.constant 0 : i32
    %c0_i32_0 = arith.constant 0 : i32
    %c0_i32_1 = arith.constant 0 : i32
    return %c0_i32, %c0_i32_0 : i32, i32
  }
  func.func @transform_7(%arg0: i32) -> (i32, i32) {
    %c0_i32 = arith.constant 0 : i32
    %c0_i32_0 = arith.constant 0 : i32
    return %c0_i32, %arg0 : i32, i32
  }
}

</mosaic_0001>

<llo_original>
// kernel: tpu_custom_call.1
$region0: #{tpu_custom_call.1}
  #allocation0 [shape = 'u32[]', space=smem, size = 0x4, offset = 0x4, fixed_abs, tag = 'smem constant byte address 0x4 - core index']
  #allocation1 [shape = 'u32[144,128]{1,0:T(1,128)}', space=vmem, size = 0x12000, scoped, tag = 'internal scratch']
  #allocation2 [shape = 'f32[1,1]{1,0:T(1,128)S(1)}', space=vmem, size = 0x200, scoped, tag = 'scoped memory for tpu_custom_call.1']
  %s0 = inlined_call_operand.vmem [shape: f32[1,128], index: 0, kind: input, shape index: {}]
  %s1 = inlined_call_operand.vmem [shape: f32[64,1], index: 1, kind: input, shape index: {}]
  %s2 = inlined_call_operand.vmem [shape: f32[64,1], index: 2, kind: input, shape index: {}]
  %s3 = inlined_call_operand.vmem [shape: f32[64,64], index: 3, kind: input, shape index: {}]
  %s4 = inlined_call_operand.vmem [shape: f32[64,1], index: 4, kind: input, shape index: {}]
  %s5 = inlined_call_operand.vmem [shape: f32[64,1], index: 5, kind: input, shape index: {}]
  %s6 = inlined_call_operand.<no memory space> [shape: f32[1,1], index: 6, kind: input, shape index: {}]
  %s7 = inlined_call_operand.hbm [shape: f32[1,128], index: 7, kind: output, shape index: {}]
  %s8 = sld [smem:[#allocation0]]
  $region38: #{tpu_custom_call.1} parent=0
    _
  %s10 = ssub.s32 1, %s8
  %s11 = scalar_select 0, %s10, %s8
  %v12 = vstv %s6
  %13 = vst [vmem:[#allocation2] sm:$0x1] %v12
  $region1: #{tpu_custom_call.1} parent=0
    #allocation3 [shape = 'u8[512]{0}', space=vmem, size = 0x400, scoped, tag = 'output window, operand 0, single buffered']
    #allocation4 [shape = 's32[1]{0}', space=sflag, size = 0x4, scoped, tag = 'scoped memory for tpu_custom_call.1']
    %14 = vsyncpa [#allocation4], 0
    // Predicated region
    $region2: #{tpu_custom_call.1} parent=1 // pred_check
      _
    $region3: #{tpu_custom_call.1} parent=1 // pred_check_branch
      %16 = sbr.rel (0) target = $region5
    $region4: #{tpu_custom_call.1} parent=1 // pred_region
      _
    $region5: #{tpu_custom_call.1} parent=1 // pred_fallthru
      _
    // Predicated region
    $region6: #{tpu_custom_call.1} parent=1 // pred_check
      _
    $region7: #{tpu_custom_call.1} parent=1 // pred_check_branch
      %18 = sbr.rel (0) target = $region9
    $region8: #{tpu_custom_call.1} parent=1 // pred_region
      _
    $region9: #{tpu_custom_call.1} parent=1 // pred_fallthru
      _
    // Predicated region
    $region10: #{tpu_custom_call.1} parent=1 // pred_check
      _
    $region11: #{tpu_custom_call.1} parent=1 // pred_check_branch
      %20 = sbr.rel (0) target = $region13
    $region12: #{tpu_custom_call.1} parent=1 // pred_region
      _
    $region13: #{tpu_custom_call.1} parent=1 // pred_fallthru
      _
    // Predicated region
    $region14: #{tpu_custom_call.1} parent=1 // pred_check
      _
    $region15: #{tpu_custom_call.1} parent=1 // pred_check_branch
      %22 = sbr.rel (0) target = $region17
    $region16: #{tpu_custom_call.1} parent=1 // pred_region
      _
    $region17: #{tpu_custom_call.1} parent=1 // pred_fallthru
      _
    // Predicated region
    $region18: #{tpu_custom_call.1} parent=1 // pred_check
      _
    $region19: #{tpu_custom_call.1} parent=1 // pred_check_branch
      %24 = sbr.rel (0) target = $region21
    $region20: #{tpu_custom_call.1} parent=1 // pred_region
      _
    $region21: #{tpu_custom_call.1} parent=1 // pred_fallthru
      _
    // Predicated region
    $region22: #{tpu_custom_call.1} parent=1 // pred_check
      _
    $region23: #{tpu_custom_call.1} parent=1 // pred_check_branch
      %26 = sbr.rel (0) target = $region25
    $region24: #{tpu_custom_call.1} parent=1 // pred_region
      _
    $region25: #{tpu_custom_call.1} parent=1 // pred_fallthru
      _
    // Predicated region
    $region26: #{tpu_custom_call.1} parent=1 // pred_check
      _
    $region27: #{tpu_custom_call.1} parent=1 // pred_check_branch
      %28 = sbr.rel (0) target = $region29
    $region28: #{tpu_custom_call.1} parent=1 // pred_region
      _
    $region29: #{tpu_custom_call.1} parent=1 // pred_fallthru
      _
    %v29 = vld [vmem:[%s0] sm:$0x1]
    %v30 = vld [vmem:[%s1] sm:$0xff]
    %v31 = vld [vmem:[%s1 + $0x8] sm:$0xff]
    %v32 = vld [vmem:[%s1 + $0x10] sm:$0xff]
    %v33 = vld [vmem:[%s1 + $0x18] sm:$0xff]
    %v34 = vld [vmem:[%s1 + $0x20] sm:$0xff]
    %v35 = vld [vmem:[%s1 + $0x28] sm:$0xff]
    %v36 = vld [vmem:[%s1 + $0x30] sm:$0xff]
    %v37 = vld [vmem:[%s1 + $0x38] sm:$0xff]
    %39 = vset.pattern.permute.xlu0 0
    %40 = vperm.xlu0 %39, %v30
    %v41 = vpop.permute.xlu0 %40
    %44 = vset.pattern.permute.xlu0 0
    %45 = vperm.xlu0 %44, %v31
    %v46 = vpop.permute.xlu0 %45
    %49 = vset.pattern.permute.xlu0 0
    %50 = vperm.xlu0 %49, %v32
    %v51 = vpop.permute.xlu0 %50
    %54 = vset.pattern.permute.xlu0 0
    %55 = vperm.xlu0 %54, %v33
    %v56 = vpop.permute.xlu0 %55
    %59 = vset.pattern.permute.xlu0 0
    %60 = vperm.xlu0 %59, %v34
    %v61 = vpop.permute.xlu0 %60
    %64 = vset.pattern.permute.xlu0 0
    %65 = vperm.xlu0 %64, %v35
    %v66 = vpop.permute.xlu0 %65
    %69 = vset.pattern.permute.xlu0 0
    %70 = vperm.xlu0 %69, %v36
    %v71 = vpop.permute.xlu0 %70
    %74 = vset.pattern.permute.xlu0 0
    %75 = vperm.xlu0 %74, %v37
    %v76 = vpop.permute.xlu0 %75
    %v79 = vlaneseq
    %v80 = vshrl.u32 %v79, 7
    %v81 = vsub.s32 0, %v80
    %v82 = vrot.slane %v29, %v81
    %v84 = vmul.f32 %v41, %v82
    %v85 = vmul.f32 %v46, %v82
    %v86 = vmul.f32 %v51, %v82
    %v87 = vmul.f32 %v56, %v82
    %v88 = vmul.f32 %v61, %v82
    %v89 = vmul.f32 %v66, %v82
    %v90 = vmul.f32 %v71, %v82
    %v91 = vmul.f32 %v76, %v82
    %v92 = vld [vmem:[%s2] sm:$0xff]
    %v93 = vld [vmem:[%s2 + $0x8] sm:$0xff]
    %v94 = vld [vmem:[%s2 + $0x10] sm:$0xff]
    %v95 = vld [vmem:[%s2 + $0x18] sm:$0xff]
    %v96 = vld [vmem:[%s2 + $0x20] sm:$0xff]
    %v97 = vld [vmem:[%s2 + $0x28] sm:$0xff]
    %v98 = vld [vmem:[%s2 + $0x30] sm:$0xff]
    %v99 = vld [vmem:[%s2 + $0x38] sm:$0xff]
    %101 = vset.pattern.permute.xlu0 0
    %102 = vperm.xlu0 %101, %v92
    %v103 = vpop.permute.xlu0 %102
    %106 = vset.pattern.permute.xlu0 0
    %107 = vperm.xlu0 %106, %v93
    %v108 = vpop.permute.xlu0 %107
    %111 = vset.pattern.permute.xlu0 0
    %112 = vperm.xlu0 %111, %v94
    %v113 = vpop.permute.xlu0 %112
    %116 = vset.pattern.permute.xlu0 0
    %117 = vperm.xlu0 %116, %v95
    %v118 = vpop.permute.xlu0 %117
    %121 = vset.pattern.permute.xlu0 0
    %122 = vperm.xlu0 %121, %v96
    %v123 = vpop.permute.xlu0 %122
    %126 = vset.pattern.permute.xlu0 0
    %127 = vperm.xlu0 %126, %v97
    %v128 = vpop.permute.xlu0 %127
    %131 = vset.pattern.permute.xlu0 0
    %132 = vperm.xlu0 %131, %v98
    %v133 = vpop.permute.xlu0 %132
    %136 = vset.pattern.permute.xlu0 0
    %137 = vperm.xlu0 %136, %v99
    %v138 = vpop.permute.xlu0 %137
    %v140 = vadd.f32 %v84, %v103
    %v141 = vadd.f32 %v85, %v108
    %v142 = vadd.f32 %v86, %v113
    %v143 = vadd.f32 %v87, %v118
    %v144 = vadd.f32 %v88, %v123
    %v145 = vadd.f32 %v89, %v128
    %v146 = vadd.f32 %v90, %v133
    %v147 = vadd.f32 %v91, %v138
    %v148 = vtanh.pop %v140
    %v149 = vtanh.pop %v141
    %v150 = vtanh.pop %v142
    %v151 = vtanh.pop %v143
    %v152 = vtanh.pop %v144
    %v153 = vtanh.pop %v145
    %v154 = vtanh.pop %v146
    %v155 = vtanh.pop %v147
    %v156 = vld [vmem:[%s3] sm:$0xff]
    %v157 = vld [vmem:[%s3 + $0x8] sm:$0xff]
    %v158 = vld [vmem:[%s3 + $0x10] sm:$0xff]
    %v159 = vld [vmem:[%s3 + $0x18] sm:$0xff]
    %v160 = vld [vmem:[%s3 + $0x20] sm:$0xff]
    %v161 = vld [vmem:[%s3 + $0x28] sm:$0xff]
    %v162 = vld [vmem:[%s3 + $0x30] sm:$0xff]
    %v163 = vld [vmem:[%s3 + $0x38] sm:$0xff]
    %v164 = vld [vmem:[%s4] sm:$0xff]
    %v165 = vld [vmem:[%s4 + $0x8] sm:$0xff]
    %v166 = vld [vmem:[%s4 + $0x10] sm:$0xff]
    %v167 = vld [vmem:[%s4 + $0x18] sm:$0xff]
    %v168 = vld [vmem:[%s4 + $0x20] sm:$0xff]
    %v169 = vld [vmem:[%s4 + $0x28] sm:$0xff]
    %v170 = vld [vmem:[%s4 + $0x30] sm:$0xff]
    %v171 = vld [vmem:[%s4 + $0x38] sm:$0xff]
    %173 = vset.pattern.permute.xlu0 0
    %174 = vperm.xlu0 %173, %v164
    %v175 = vpop.permute.xlu0 %174
    %178 = vset.pattern.permute.xlu0 0
    %179 = vperm.xlu0 %178, %v165
    %v180 = vpop.permute.xlu0 %179
    %183 = vset.pattern.permute.xlu0 0
    %184 = vperm.xlu0 %183, %v166
    %v185 = vpop.permute.xlu0 %184
    %188 = vset.pattern.permute.xlu0 0
    %189 = vperm.xlu0 %188, %v167
    %v190 = vpop.permute.xlu0 %189
    %193 = vset.pattern.permute.xlu0 0
    %194 = vperm.xlu0 %193, %v168
    %v195 = vpop.permute.xlu0 %194
    %198 = vset.pattern.permute.xlu0 0
    %199 = vperm.xlu0 %198, %v169
    %v200 = vpop.permute.xlu0 %199
    %203 = vset.pattern.permute.xlu0 0
    %204 = vperm.xlu0 %203, %v170
    %v205 = vpop.permute.xlu0 %204
    %208 = vset.pattern.permute.xlu0 0
    %209 = vperm.xlu0 %208, %v171
    %v210 = vpop.permute.xlu0 %209
    %vm212 = vcmask 523264
    %v214 = vsel %vm212, %v156, 0
    %v217 = vsel %vm212, %v157, 0
    %v220 = vsel %vm212, %v158, 0
    %v223 = vsel %vm212, %v159, 0
    %v226 = vsel %vm212, %v160, 0
    %v229 = vsel %vm212, %v161, 0
    %v232 = vsel %vm212, %v162, 0
    %v235 = vsel %vm212, %v163, 0
    %237 = vmatprep.subr.mxu0 0.0
    %238 = vmatpush1.msra.mxu0 0.0
    %239 = vmatprep.subr.mxu0 0.0
    %240 = vmatpush1.msra.mxu0 0.0
    %241 = vmatprep.subr.mxu0 0.0
    %242 = vmatpush1.msra.mxu0 0.0
    %243 = vmatprep.subr.mxu0 0.0
    %244 = vmatpush1.msra.mxu0 0.0
    %245 = vmatprep.subr.mxu0 0.0
    %246 = vmatpush1.msra.mxu0 0.0
    %247 = vmatprep.subr.mxu0 0.0
    %248 = vmatpush1.msra.mxu0 0.0
    %249 = vmatprep.subr.mxu0 0.0
    %250 = vmatpush1.msra.mxu0 0.0
    %251 = vmatprep.subr.mxu0 0.0
    %252 = vmatpush1.msra.mxu0 0.0
    %253 = vmatprep.subr.mxu0 0.0
    %254 = vmatpush1.msra.mxu0 %v155
    %255 = vmatprep.subr.mxu0 0.0
    %256 = vmatpush1.msra.mxu0 %v154
    %257 = vmatprep.subr.mxu0 0.0
    %258 = vmatpush1.msra.mxu0 %v153
    %259 = vmatprep.subr.mxu0 0.0
    %260 = vmatpush1.msra.mxu0 %v152
    %261 = vmatprep.subr.mxu0 0.0
    %262 = vmatpush1.msra.mxu0 %v151
    %263 = vmatprep.subr.mxu0 0.0
    %264 = vmatpush1.msra.mxu0 %v150
    %265 = vmatprep.subr.mxu0 0.0
    %266 = vmatpush1.msra.mxu0 %v149
    %267 = vmatprep.subr.mxu0 0.0
    %268 = vmatpush1.msra.mxu0 %v148
    %269 = vmatprep.subr.mxu0 0.0
    %270 = vmatpush2.msra.mxu0 0.0
    %271 = vmatprep.subr.mxu0 0.0
    %272 = vmatpush2.msra.mxu0 0.0
    %273 = vmatprep.subr.mxu0 0.0
    %274 = vmatpush2.msra.mxu0 0.0
    %275 = vmatprep.subr.mxu0 0.0
    %276 = vmatpush2.msra.mxu0 0.0
    %277 = vmatprep.subr.mxu0 0.0
    %278 = vmatpush2.msra.mxu0 0.0
    %279 = vmatprep.subr.mxu0 0.0
    %280 = vmatpush2.msra.mxu0 0.0
    %281 = vmatprep.subr.mxu0 0.0
    %282 = vmatpush2.msra.mxu0 0.0
    %283 = vmatprep.subr.mxu0 0.0
    %284 = vmatpush2.msra.mxu0 0.0
    %285 = vmatprep.subr.mxu0 0.0
    %286 = vmatpush2.msra.mxu0 0.0
    %287 = vmatprep.subr.mxu0 0.0
    %288 = vmatpush2.msra.mxu0 0.0
    %289 = vmatprep.subr.mxu0 0.0
    %290 = vmatpush2.msra.mxu0 0.0
    %291 = vmatprep.subr.mxu0 0.0
    %292 = vmatpush2.msra.mxu0 0.0
    %293 = vmatprep.subr.mxu0 0.0
    %294 = vmatpush2.msra.mxu0 0.0
    %295 = vmatprep.subr.mxu0 0.0
    %296 = vmatpush2.msra.mxu0 0.0
    %297 = vmatprep.subr.mxu0 0.0
    %298 = vmatpush2.msra.mxu0 0.0
    %299 = vmatprep.subr.mxu0 0.0
    %300 = vmatpush2.msra.mxu0 0.0
    %301 = vmatprep.mubr.f32.mxu0 0.0
    %302 = vmatmul.mubr.f32.gmra.mxu0 %v214
    %v303 = vpop.f32.mrf.mxu0
    %v304 = vadd.f32 %v175, %v303
    %v305 = vpop.f32.mrf.mxu0
    %306 = vmatprep.mubr.f32.mxu0 0.0
    %307 = vmatmul.mubr.f32.gmra.mxu0 %v217
    %v308 = vpop.f32.mrf.mxu0
    %v309 = vadd.f32 %v180, %v308
    %v310 = vpop.f32.mrf.mxu0
    %311 = vmatprep.mubr.f32.mxu0 0.0
    %312 = vmatmul.mubr.f32.gmra.mxu0 %v220
    %v313 = vpop.f32.mrf.mxu0
    %v314 = vadd.f32 %v185, %v313
    %v315 = vpop.f32.mrf.mxu0
    %316 = vmatprep.mubr.f32.mxu0 0.0
    %317 = vmatmul.mubr.f32.gmra.mxu0 %v223
    %v318 = vpop.f32.mrf.mxu0
    %v319 = vadd.f32 %v190, %v318
    %v320 = vpop.f32.mrf.mxu0
    %321 = vmatprep.mubr.f32.mxu0 0.0
    %322 = vmatmul.mubr.f32.gmra.mxu0 %v226
    %v323 = vpop.f32.mrf.mxu0
    %v324 = vadd.f32 %v195, %v323
    %v325 = vpop.f32.mrf.mxu0
    %326 = vmatprep.mubr.f32.mxu0 0.0
    %327 = vmatmul.mubr.f32.gmra.mxu0 %v229
    %v328 = vpop.f32.mrf.mxu0
    %v329 = vadd.f32 %v200, %v328
    %v330 = vpop.f32.mrf.mxu0
    %331 = vmatprep.mubr.f32.mxu0 0.0
    %332 = vmatmul.mubr.f32.gmra.mxu0 %v232
    %v333 = vpop.f32.mrf.mxu0
    %v334 = vadd.f32 %v205, %v333
    %v335 = vpop.f32.mrf.mxu0
    %336 = vmatprep.mubr.f32.mxu0 0.0
    %337 = vmatmul.mubr.f32.gmra.mxu0 %v235
    %v338 = vpop.f32.mrf.mxu0
    %v339 = vadd.f32 %v210, %v338
    %v340 = vpop.f32.mrf.mxu0
    %341 = vdwg.mxu0
    %v342 = vtanh.pop %v304
    %v343 = vtanh.pop %v309
    %v344 = vtanh.pop %v314
    %v345 = vtanh.pop %v319
    %v346 = vtanh.pop %v324
    %v347 = vtanh.pop %v329
    %v348 = vtanh.pop %v334
    %v349 = vtanh.pop %v339
    %v350 = vld [vmem:[%s5] sm:$0xff]
    %v351 = vld [vmem:[%s5 + $0x8] sm:$0xff]
    %v352 = vld [vmem:[%s5 + $0x10] sm:$0xff]
    %v353 = vld [vmem:[%s5 + $0x18] sm:$0xff]
    %v354 = vld [vmem:[%s5 + $0x20] sm:$0xff]
    %v355 = vld [vmem:[%s5 + $0x28] sm:$0xff]
    %v356 = vld [vmem:[%s5 + $0x30] sm:$0xff]
    %v357 = vld [vmem:[%s5 + $0x38] sm:$0xff]
    %359 = vset.pattern.permute.xlu0 0
    %360 = vperm.xlu0 %359, %v350
    %v361 = vpop.permute.xlu0 %360
    %364 = vset.pattern.permute.xlu0 0
    %365 = vperm.xlu0 %364, %v351
    %v366 = vpop.permute.xlu0 %365
    %369 = vset.pattern.permute.xlu0 0
    %370 = vperm.xlu0 %369, %v352
    %v371 = vpop.permute.xlu0 %370
    %374 = vset.pattern.permute.xlu0 0
    %375 = vperm.xlu0 %374, %v353
    %v376 = vpop.permute.xlu0 %375
    %379 = vset.pattern.permute.xlu0 0
    %380 = vperm.xlu0 %379, %v354
    %v381 = vpop.permute.xlu0 %380
    %384 = vset.pattern.permute.xlu0 0
    %385 = vperm.xlu0 %384, %v355
    %v386 = vpop.permute.xlu0 %385
    %389 = vset.pattern.permute.xlu0 0
    %390 = vperm.xlu0 %389, %v356
    %v391 = vpop.permute.xlu0 %390
    %394 = vset.pattern.permute.xlu0 0
    %395 = vperm.xlu0 %394, %v357
    %v396 = vpop.permute.xlu0 %395
    %v398 = vmul.f32 %v342, %v361
    %v399 = vmul.f32 %v343, %v366
    %v400 = vmul.f32 %v344, %v371
    %v401 = vmul.f32 %v345, %v376
    %v402 = vmul.f32 %v346, %v381
    %v403 = vmul.f32 %v347, %v386
    %v404 = vmul.f32 %v348, %v391
    %v405 = vmul.f32 %v349, %v396
    %v406 = vadd.f32 %v398, %v399
    %v407 = vadd.f32 %v406, %v400
    %v408 = vadd.f32 %v407, %v401
    %v409 = vadd.f32 %v408, %v402
    %v410 = vadd.f32 %v409, %v403
    %v411 = vadd.f32 %v410, %v404
    %v412 = vadd.f32 %v411, %v405
    %v413 = vrot.slane %v412, 4
    %v414 = vadd.f32 %v412, %v413
    %v415 = vrot.slane %v414, 2
    %v416 = vadd.f32 %v414, %v415
    %v417 = vrot.slane %v416, 1
    %v418 = vadd.f32 %v416, %v417
    %v419 = vld [vmem:[#allocation2] sm:$0x1]
    %421 = vset.pattern.permute.xlu0 0
    %422 = vperm.xlu0 %421, %v419
    %v423 = vpop.permute.xlu0 %422
    %v425 = vlaneseq
    %v426 = vshrl.u32 %v425, 7
    %v427 = vsub.s32 0, %v426
    %v428 = vrot.slane %v423, %v427
    %v429 = vadd.f32 %v418, %v428
    %430 = vst [vmem:[#allocation3] sm:$0x1] %v429
    // Predicated region
    $region30: #{tpu_custom_call.1} parent=1 // pred_check
      _
    $region31: #{tpu_custom_call.1} parent=1 // pred_check_branch
      %432 = sbr.rel (0) target = $region33
    $region32: #{tpu_custom_call.1} parent=1 // pred_region
      %s434 = ssub.s32 16, 16
      %435 = vsyncadd [#allocation4], %s434
      %s437 = sshll.u32 [#allocation3], 4
      %s438 = int_to_ptr.vmem [resolvable:$true] %s437
      %440 = dma.vmem_to_hbm [thread:$0]  %s438, 16, %s7, [#allocation4]
    $region33: #{tpu_custom_call.1} parent=1 // pred_fallthru
      _
    // Predicated region
    $region34: #{tpu_custom_call.1} parent=1 // pred_check
      _
    $region35: #{tpu_custom_call.1} parent=1 // pred_check_branch
      %442 = sbr.rel (0) target = $region37
    $region36: #{tpu_custom_call.1} parent=1 // pred_region
      %443 = dma.done [#allocation4], 16
    $region37: #{tpu_custom_call.1} parent=1 // pred_fallthru
      _
    %444 = vsyncpa [#allocation4], 1

</llo_original>
